<compile_context>
chip_gen: v6e
topology: v6e:2x2x1
jax: 0.10.0
libtpu: 0.0.40
codegen_flags: <defaults>
</compile_context>

<pallas_src>
import math

import jax
import jax.numpy as jnp
from jax.experimental import pallas as pl
from jax.experimental.pallas import tpu as pltpu


_TARGET_TILE_BYTES = 8 * 1024 * 1024    # per-tile output bytes (amortizes step overhead)
_VMEM_LIMIT_BYTES = 48 * 1024 * 1024    # 2x out tile + 2x pattern tile fits on all gens


def _round_up(a, m):
    return ((a + m - 1) // m) * m


def _sublane_rows(itemsize):
    # f32 -> 8, bf16/f16 -> 16, int8/fp8 -> 32 (packed sublanes).
    return max(8, 32 // int(itemsize))


def _copy_kernel(pattern_ref, out_ref):
    # pattern_ref: (tn, 128) -- pre-tiled, grid-invariant (DMA'd once).
    # out_ref:     (tn, 128) -- full unmasked 128-lane stores.
    out_ref[...] = pattern_ref[...]


def _row_broadcast_kernel(row_ref, out_ref):
    # row_ref: (1, emb_dim) with emb_dim % 128 == 0; out_ref: (tn, emb_dim).
    out_ref[...] = jnp.broadcast_to(row_ref[...], out_ref.shape)


def ppa_node_encoder(x, emb_table):
    """Pallas equivalent of PPANodeEncoder.forward: batch.x -> encoder(batch.x).

    Args:
      x:         int array of shape [N] (node indices; all zeros for PPA since
                 the table has a single row, so only len(x) matters).
      emb_table: float array of shape [1, emb_dim] (nn.Embedding(1, emb_dim)
                 weight).

    Returns:
      Array of shape [N, emb_dim] (dtype of emb_table): emb_table[x].
    """
    n = int(x.shape[0])
    num_emb, emb_dim = emb_table.shape
    if num_emb != 1:
        # TODO(synk): PPANodeEncoder always uses num_embeddings == 1; a general
        # embedding gather (SMEM-indexed select / DMA gather) is out of scope.
        raise NotImplementedError("PPANodeEncoder uses a single embedding row.")

    dtype = emb_table.dtype
    itemsize = jnp.dtype(dtype).itemsize
    if n == 0:
        return jnp.zeros((0, emb_dim), dtype)

    sublane = _sublane_rows(itemsize)
    total = n * emb_dim

    # ---------- Path A: emb_dim is a multiple of 128 -> output is already
    # lane-dense; emit (tn, emb_dim) blocks of (N, emb_dim) directly.
    if emb_dim % 128 == 0:
        row_bytes = emb_dim * itemsize
        cap = max(sublane, (_TARGET_TILE_BYTES // row_bytes) // sublane * sublane)
        half = _round_up(pl.cdiv(n, 2), sublane)   # prefer >=2 tiles (v7x megacore)
        tn = max(sublane, min(cap, half))
        grid = (pl.cdiv(n, tn),)
        cost = pl.CostEstimate(
            flops=0, transcendentals=0,
            bytes_accessed=int((total + emb_dim) * itemsize))
        return pl.pallas_call(
            _row_broadcast_kernel,
            out_shape=jax.ShapeDtypeStruct((n, emb_dim), dtype),
            grid_spec=pltpu.PrefetchScalarGridSpec(
                num_scalar_prefetch=0,
                grid=grid,
                in_specs=[pl.BlockSpec((1, emb_dim), lambda i: (0, 0))],
                out_specs=pl.BlockSpec((tn, emb_dim), lambda i: (i, 0)),
            ),
            compiler_params=pltpu.CompilerParams(
                dimension_semantics=("parallel",),
                vmem_limit_bytes=_VMEM_LIMIT_BYTES),
            cost_estimate=cost,
        )(emb_table)

    # ---------- Path B: general emb_dim -> view the row-major output as a
    # lane-dense [R, 128] slab (periodic with period pp rows) and copy a
    # pre-tiled pattern tile into successive slab tiles.
    g = math.gcd(emb_dim, 128)
    p = emb_dim // g                                  # minimal period in slab rows
    pp = (p * sublane) // math.gcd(p, sublane)        # lcm(p, sublane): aligned period
    r_out = pl.cdiv(total, 128)                       # slab rows needed to cover total
    row_bytes = 128 * itemsize
    cap = max(pp, (_TARGET_TILE_BYTES // row_bytes) // pp * pp)
    half = _round_up(pl.cdiv(r_out, 2), pp)           # prefer >=2 tiles (v7x megacore)
    tn = max(pp, min(cap, half))
    grid = (pl.cdiv(r_out, tn),)

    # Pre-tiled full tile pattern (tn rows x 128 lanes), built once per call.
    pattern = jnp.tile(emb_table[0:1, :], (1, (tn * 128) // emb_dim)).reshape(tn, 128)

    cost = pl.CostEstimate(
        flops=0, transcendentals=0,
        bytes_accessed=int((r_out * 128 + tn * 128) * itemsize))

    slab = pl.pallas_call(
        _copy_kernel,
        out_shape=jax.ShapeDtypeStruct((r_out, 128), dtype),
        grid_spec=pltpu.PrefetchScalarGridSpec(
            num_scalar_prefetch=0,
            grid=grid,
            in_specs=[pl.BlockSpec((tn, 128), lambda i: (0, 0))],
            out_specs=pl.BlockSpec((tn, 128), lambda i: (i, 0)),
        ),
        compiler_params=pltpu.CompilerParams(
            dimension_semantics=("parallel",),
            vmem_limit_bytes=_VMEM_LIMIT_BYTES),
        cost_estimate=cost,
    )(pattern)

    if total % 128 == 0:
        # Row-major contiguous reshape (r_out, 128) -> (n, emb_dim): bitcast.
        return slab.reshape(n, emb_dim)
    # TODO(synk): the flat slice below materializes a copy in XLA; only hit when
    # N*emb_dim is not a multiple of 128, which is an edge case for PPA.
    return slab.reshape(-1)[:total].reshape(n, emb_dim)


if __name__ == "__main__":
    key = jax.random.PRNGKey(0)

    # --- Small demo shapes consistent with the module (emb_dim=32, N=8). ---
    emb_dim = 32
    num_nodes = 8
    emb_table = jax.random.normal(key, (1, emb_dim), dtype=jnp.float32)
    x = jnp.zeros((num_nodes,), dtype=jnp.int32)   # PPA: no node features

    out = jax.block_until_ready(ppa_node_encoder(x, emb_table))
    ref = emb_table[x]
    assert out.shape == (num_nodes, emb_dim)
    assert out.dtype == jnp.float32
    assert jnp.allclose(out, ref, atol=1e-6), "mismatch vs reference embedding"

    # --- Multi-tile lane-dense slab case (exercises grid / partial last tile).
    n2 = 10000
    x2 = jnp.zeros((n2,), dtype=jnp.int32)
    out2 = jax.block_until_ready(ppa_node_encoder(x2, emb_table))
    assert out2.shape == (n2, emb_dim)
    assert jnp.allclose(out2, jnp.broadcast_to(emb_table[0], (n2, emb_dim)),
                        atol=1e-6), "mismatch on tiled slab path"

    # --- emb_dim % 128 == 0: direct (N, emb_dim) output path. ---
    emb_dim_a = 128
    n_a = 2000
    table_a = jax.random.normal(jax.random.PRNGKey(0), (1, emb_dim_a),
                                dtype=jnp.float32)
    x_a = jnp.zeros((n_a,), dtype=jnp.int32)
    out_a = jax.block_until_ready(ppa_node_encoder(x_a, table_a))
    assert out_a.shape == (n_a, emb_dim_a)
    assert jnp.allclose(out_a, jnp.broadcast_to(table_a[0], (n_a, emb_dim_a)),
                        atol=1e-6), "mismatch on direct (N, emb_dim) path"

    # --- N * emb_dim not a multiple of 128: padded slab + tail slice. ---
    emb_dim3 = 24
    n3 = 7
    table3 = jax.random.normal(jax.random.PRNGKey(0), (1, emb_dim3),
                               dtype=jnp.float32)
    x3 = jnp.zeros((n3,), dtype=jnp.int32)
    out3 = jax.block_until_ready(ppa_node_encoder(x3, table3))
    assert out3.shape == (n3, emb_dim3)
    assert jnp.allclose(out3, table3[x3], atol=1e-6), "mismatch on padded path"

    # --- bf16 table: dtype-aware (16, 128) sublane alignment. ---
    n_b = 128
    table_b = jax.random.normal(jax.random.PRNGKey(0), (1, emb_dim),
                                dtype=jnp.bfloat16)
    x_b = jnp.zeros((n_b,), dtype=jnp.int32)
    out_b = jax.block_until_ready(ppa_node_encoder(x_b, table_b))
    assert out_b.shape == (n_b, emb_dim)
    assert jnp.allclose(out_b.astype(jnp.float32),
                        jnp.broadcast_to(table_b[0], (n_b, emb_dim)).astype(jnp.float32),
                        atol=1e-6), "mismatch on bf16 path"

    print("KERNEL_OK")
</pallas_src>

<mosaic_0001>
module attributes {stable_mosaic.version = 11 : i64} {
  func.func @_copy_kernel(%arg0: i32, %arg1: memref<8x128xf32, #tpu.memory_space<vmem>>, %arg2: memref<8x128xf32, #tpu.memory_space<vmem>>) attributes {dimension_semantics = [#tpu.dimension_semantics<parallel>], iteration_bounds = array<i64: 1>, scalar_prefetch = 0 : i64, scratch_operands = 0 : i64, tpu.core_type = #tpu.core_type<tc>, window_params = [{pipeline_mode = #tpu.pipeline_mode<synchronous>, transform_indices = @transform_0, window_bounds = array<i64: 8, 128>}, {transform_indices = @transform_1, window_bounds = array<i64: 8, 128>}]} {
    %c0 = arith.constant 0 : index
    %c0_0 = arith.constant 0 : index
    %0 = vector.load %arg1[%c0, %c0_0] : memref<8x128xf32, #tpu.memory_space<vmem>>, vector<8x128xf32>
    %c0_1 = arith.constant 0 : index
    %c0_2 = arith.constant 0 : index
    %1 = vector.load %arg2[%c0_1, %c0_2] : memref<8x128xf32, #tpu.memory_space<vmem>>, vector<8x128xf32>
    tpu.vector_store %arg2[%c0_1, %c0_2], %0 {strides = array<i32>} : memref<8x128xf32, #tpu.memory_space<vmem>>, vector<8x128xf32>,
    return
  }
  func.func @transform_0(%arg0: i32) -> (i32, i32) {
    %c0_i32 = arith.constant 0 : i32
    %c0_i32_0 = arith.constant 0 : i32
    %c0_i32_1 = arith.constant 0 : i32
    return %c0_i32, %c0_i32_0 : i32, i32
  }
  func.func @transform_1(%arg0: i32) -> (i32, i32) {
    %c0_i32 = arith.constant 0 : i32
    %c0_i32_0 = arith.constant 0 : i32
    return %arg0, %c0_i32 : i32, i32
  }
}

</mosaic_0001>

<llo_original>
// kernel: tpu_custom_call.1
$region0: #{tpu_custom_call.1}
  #allocation0 [shape = 'u32[]', space=smem, size = 0x4, offset = 0x4, fixed_abs, tag = 'smem constant byte address 0x4 - core index']
  #allocation1 [shape = 'u32[144,128]{1,0:T(1,128)}', space=vmem, size = 0x12000, scoped, tag = 'internal scratch']
  %s0 = inlined_call_operand.hbm [shape: f32[8,128], index: 0, kind: input, shape index: {}]
  %s1 = inlined_call_operand.hbm [shape: f32[2,128], index: 1, kind: output, shape index: {}]
  %s2 = sld [smem:[#allocation0]]
  $region18: #{tpu_custom_call.1} parent=0
    _
  %s4 = ssub.s32 1, %s2
  %s5 = scalar_select 0, %s4, %s2
  $region1: #{tpu_custom_call.1} parent=0
    #allocation2 [shape = 'u8[4096]{0}', space=vmem, size = 0x1000, scoped, tag = 'input window, operand 0, single buffered']
    #allocation3 [shape = 's32[1]{0}', space=sflag, size = 0x4, scoped, tag = 'scoped memory for tpu_custom_call.1']
    #allocation4 [shape = 's32[1]{0}', space=sflag, size = 0x4, scoped, tag = 'scoped memory for tpu_custom_call.1']
    #allocation5 [shape = 'u8[4096]{0}', space=vmem, size = 0x1000, scoped, tag = 'output window, operand 0, single buffered']
    %6 = vsyncpa [#allocation3], 0
    %7 = vsyncpa [#allocation4], 0
    // Predicated region
    $region2: #{tpu_custom_call.1} parent=1 // pred_check
      _
    $region3: #{tpu_custom_call.1} parent=1 // pred_check_branch
      %9 = sbr.rel (0) target = $region5
    $region4: #{tpu_custom_call.1} parent=1 // pred_region
      %s11 = ssub.s32 128, 128
      %12 = vsyncadd [#allocation3], %s11
      %s14 = sshll.u32 [#allocation2], 4
      %s15 = int_to_ptr.vmem [resolvable:$true] %s14
      %17 = dma.hbm_to_vmem [thread:$0]  %s0, 128, %s15, [#allocation3]
    $region5: #{tpu_custom_call.1} parent=1 // pred_fallthru
      _
    // Predicated region
    $region6: #{tpu_custom_call.1} parent=1 // pred_check
      _
    $region7: #{tpu_custom_call.1} parent=1 // pred_check_branch
      %19 = sbr.rel (0) target = $region9
    $region8: #{tpu_custom_call.1} parent=1 // pred_region
      %20 = dma.done [#allocation3], 128
    $region9: #{tpu_custom_call.1} parent=1 // pred_fallthru
      _
    %v21 = vld [vmem:[#allocation2] sm:$0xff]
    %22 = vst [vmem:[#allocation5] sm:$0xff] %v21
    // Predicated region
    $region10: #{tpu_custom_call.1} parent=1 // pred_check
      _
    $region11: #{tpu_custom_call.1} parent=1 // pred_check_branch
      %24 = sbr.rel (0) target = $region13
    $region12: #{tpu_custom_call.1} parent=1 // pred_region
      %s26 = ssub.s32 128, 32
      %27 = vsyncadd [#allocation4], %s26
      %s28 = sshll.u32 [#allocation5], 4
      %s29 = int_to_ptr.vmem [resolvable:$true] %s28
      %34 = dma.vmem_to_hbm [thread:$0]  %s29, 32, %s1, [#allocation4], 32, 32, 2
    $region13: #{tpu_custom_call.1} parent=1 // pred_fallthru
      _
    // Predicated region
    $region14: #{tpu_custom_call.1} parent=1 // pred_check
      _
    $region15: #{tpu_custom_call.1} parent=1 // pred_check_branch
      %36 = sbr.rel (0) target = $region17
    $region16: #{tpu_custom_call.1} parent=1 // pred_region
      %37 = dma.done [#allocation4], 128
    $region17: #{tpu_custom_call.1} parent=1 // pred_fallthru
      _
    %38 = vsyncpa [#allocation3], 1
    %39 = vsyncpa [#allocation4], 1

</llo_original>
